<compile_context>
chip_gen: v5e
topology: v5e:2x2
jax: 0.10.0
libtpu: 0.0.40
codegen_flags: <defaults>
</compile_context>

<pallas_src>
import functools

import jax
import jax.numpy as jnp
import numpy as np
from jax import lax
from jax.experimental import pallas as pl
from jax.experimental.pallas import tpu as pltpu


# --------------------------------------------------------------------------------------
# Helpers
# --------------------------------------------------------------------------------------
def _vmem_capacity_bytes() -> int:
    """Physical VMEM per core (128 MiB v5e/v6e, 64 MiB v7x); conservative fallback."""
    try:
        info = pltpu.get_tpu_info()
        cap = getattr(info, "vmem_capacity_bytes", None)
        if cap:
            return int(cap)
    except Exception:
        pass
    return 64 * 1024 * 1024


def _pick_lane_tile(length: int, target: int) -> int:
    """Largest multiple-of-128 divisor of `length` <= target; `length` itself if none exists.

    Returning `length` is always legal: a block equal to the full array dim is exempt from the
    (8,128) divisibility rule.
    """
    if length % 128 != 0 or length <= target:
        return length
    t = (target // 128) * 128
    while t >= 128:
        if length % t == 0:
            return t
        t -= 128
    return length


# --------------------------------------------------------------------------------------
# Kernels
# --------------------------------------------------------------------------------------
def _fused_dbam_kernel(f1_ref, f2_ref, w1_ref, b1_ref, w2_ref, b2_ref, out_ref, *, inv_hw):
    """Single-read per-batch kernel: avg-pool + FC + softmax + weighted fuse.

    f1/f2/out: (1, C, HW) blocks in the native feature dtype (no pad, no wrapper casts).
    w1: (C, 2C) fc1 weight (PyTorch (out,in) layout, possibly bf16-resident),
    b1: (1, C), w2: (2, C), b2: (1, 2)  -- all fetched once (constant index_map).

    The FC is lane-major: pooled stays a (1, 2C) row vector and both matmuls contract over the
    last dim of both operands (x @ W^T), avoiding (2C,1) sublane-major vectors.
    """
    f1 = f1_ref[0]                                                          # (C, HW)
    f2 = f2_ref[0]

    # AdaptiveAvgPool2d(1): accumulate in f32, normalize by the true H*W.
    p1 = (jnp.sum(f1, axis=-1, dtype=jnp.float32) * inv_hw).reshape(1, -1)  # (1, C)
    p2 = (jnp.sum(f2, axis=-1, dtype=jnp.float32) * inv_hw).reshape(1, -1)  # (1, C)
    pooled = jnp.concatenate([p1, p2], axis=1)                              # (1, 2C)

    # fc1: (1, 2C) @ (C, 2C)^T -> (1, C).  Match lhs dtype to the (maybe bf16) resident weight.
    hidden = lax.dot_general(pooled.astype(w1_ref.dtype), w1_ref[...],
                             dimension_numbers=(((1,), (1,)), ((), ())),
                             preferred_element_type=jnp.float32) + b1_ref[...]
    hidden = jnp.maximum(hidden, 0.0)
    # fc2: (1, C) @ (2, C)^T -> (1, 2).
    logits = lax.dot_general(hidden, w2_ref[...],
                             dimension_numbers=(((1,), (1,)), ((), ())),
                             preferred_element_type=jnp.float32) + b2_ref[...]

    # Exact 2-way softmax (no approx reciprocal: the weights feed every output element).
    m = jnp.max(logits, axis=-1, keepdims=True)
    e = jnp.exp(logits - m)
    w = e / jnp.sum(e, axis=-1, keepdims=True)                              # (1, 2)

    wa = w[0, 0]
    wb = w[0, 1]
    out_ref[0] = (f1 * wa + f2 * wb).astype(out_ref.dtype)


def _fuse_weighted_sum_kernel(w_ref, f1_ref, f2_ref, out_ref):
    """Split-path elementwise fuse: out = f1 * w[2b] + f2 * w[2b+1].

    w_ref: flat (2B,) f32 softmax-weight table in SMEM (scalar reads, no 2-D SMEM padding);
    f1/f2/out: (1, t) slabs of the flat (B, C*H*W) features in their native dtype.
    """
    b = pl.program_id(0)
    wa = w_ref[2 * b]
    wb = w_ref[2 * b + 1]
    out_ref[...] = (f1_ref[...] * wa + f2_ref[...] * wb).astype(out_ref.dtype)


# --------------------------------------------------------------------------------------
# Wrappers
# --------------------------------------------------------------------------------------
def _dbam_fused(feat1, feat2, w1, b1, w2, b2, *, w1_dtype, cap):
    B, C, H, W = feat1.shape
    hw = H * W
    feat_dtype = feat1.dtype
    itemsize = jnp.dtype(feat_dtype).itemsize

    f1 = feat1.reshape(B, C, hw)                 # free metadata reshape, no pad, no cast
    f2 = feat2.reshape(B, C, hw)
    w1k = w1.astype(w1_dtype)                    # (C, 2C); bf16 only when needed for residency
    b1k = b1.reshape(1, C).astype(jnp.float32)
    w2k = w2.astype(jnp.float32)                 # (2, C)
    b2k = b2.reshape(1, 2).astype(jnp.float32)

    param_bytes = (w1k.size * jnp.dtype(w1_dtype).itemsize
                   + 4 * (b1k.size + w2k.size + b2k.size))
    feat_bytes = 3 * B * C * hw * itemsize       # 2 reads + 1 write: the real HBM cost
    cost = pl.CostEstimate(
        flops=3 * B * C * hw + B * (4 * C * C + 4 * C),
        transcendentals=2 * B,
        bytes_accessed=feat_bytes + param_bytes)

    kernel = functools.partial(_fused_dbam_kernel, inv_hw=1.0 / float(hw))

    out = pl.pallas_call(
        kernel,
        out_shape=jax.ShapeDtypeStruct((B, C, hw), feat_dtype),
        grid_spec=pltpu.PrefetchScalarGridSpec(
            num_scalar_prefetch=0,
            grid=(B,),
            in_specs=[
                pl.BlockSpec((1, C, hw), lambda b: (b, 0, 0)),   # feat1 (full-dim block)
                pl.BlockSpec((1, C, hw), lambda b: (b, 0, 0)),   # feat2
                pl.BlockSpec((C, 2 * C), lambda b: (0, 0)),      # fc1 weight (fetched once)
                pl.BlockSpec((1, C), lambda b: (0, 0)),          # fc1 bias
                pl.BlockSpec((2, C), lambda b: (0, 0)),          # fc2 weight
                pl.BlockSpec((1, 2), lambda b: (0, 0)),          # fc2 bias
            ],
            out_specs=pl.BlockSpec((1, C, hw), lambda b: (b, 0, 0)),
        ),
        compiler_params=pltpu.CompilerParams(
            dimension_semantics=("parallel",),
            vmem_limit_bytes=int(0.85 * cap)),     # ~15% headroom below physical VMEM
        cost_estimate=cost,
    )(f1, f2, w1k, b1k, w2k, b2k)

    return out.reshape(B, C, H, W)


def _dbam_split(feat1, feat2, w1, b1, w2, b2, *, cap):
    B, C, H, W = feat1.shape
    hw = H * W
    L = C * hw
    feat_dtype = feat1.dtype
    itemsize = jnp.dtype(feat_dtype).itemsize

    # Stage 1 (plain XLA, tiny GEMM): pooled mean + FC + softmax -> (B, 2) branch weights.
    # Keeps the (C, 2C) weight out of VMEM entirely and stays in f32.
    p1 = jnp.mean(feat1, axis=(2, 3), dtype=jnp.float32)
    p2 = jnp.mean(feat2, axis=(2, 3), dtype=jnp.float32)
    x = jnp.concatenate([p1, p2], axis=1)
    h = jnp.maximum(x @ w1.astype(jnp.float32).T + b1.astype(jnp.float32), 0.0)
    logits = h @ w2.astype(jnp.float32).T + b2.astype(jnp.float32)
    wflat = jax.nn.softmax(logits, axis=1).reshape(-1).astype(jnp.float32)   # (2B,) -> SMEM

    # Stage 2 (Pallas): lane-dense elementwise fuse on the flat (B, C*H*W) layout; features
    # travel HBM<->VMEM in their native dtype (no wrapper casts, no pad/slice).
    f1 = feat1.reshape(B, L)
    f2 = feat2.reshape(B, L)

    target = 512 * 1024 if B >= 2 else 32 * 1024     # whole slabs; smaller chunks when B==1
    t = _pick_lane_tile(L, target)
    grid = (B, L // t)

    cost = pl.CostEstimate(
        flops=3 * B * L, transcendentals=0,
        bytes_accessed=3 * B * L * itemsize + 2 * B * 4)

    out = pl.pallas_call(
        _fuse_weighted_sum_kernel,
        out_shape=jax.ShapeDtypeStruct((B, L), feat_dtype),
        grid_spec=pltpu.PrefetchScalarGridSpec(
            num_scalar_prefetch=0,
            grid=grid,
            in_specs=[
                pl.BlockSpec(memory_space=pltpu.MemorySpace.SMEM),   # flat (2B,) weights
                pl.BlockSpec((1, t), lambda b, j: (b, j)),           # feat1 slab
                pl.BlockSpec((1, t), lambda b, j: (b, j)),           # feat2 slab
            ],
            out_specs=pl.BlockSpec((1, t), lambda b, j: (b, j)),
        ),
        compiler_params=pltpu.CompilerParams(
            dimension_semantics=("parallel", "parallel"),
            vmem_limit_bytes=int(min(0.85 * cap, 64 << 20))),
        cost_estimate=cost,
    )(wflat, f1, f2)

    return out.reshape(B, C, H, W)


def dual_branch_attention(feat1, feat2, w1, b1, w2, b2, *,
                          force_split: bool = False,
                          allow_bf16_fc_weight: bool = True):
    """DualBranchAttentionModule.forward: feat1, feat2 (B, C, H, W) -> fused (B, C, H, W).

    Features keep their input dtype through the kernels; pooled mean / FC / softmax are f32.
    If the f32-resident fc1 weight would overflow VMEM (v7x at C=2048), the single-read fused
    path is kept by holding fc1's weight in bf16 (allow_bf16_fc_weight=False forces the exact
    split path instead).
    """
    assert feat1.shape == feat2.shape
    B, C, H, W = feat1.shape
    hw = H * W
    cap = _vmem_capacity_bytes()
    budget = int(0.80 * cap)
    feat_itemsize = jnp.dtype(feat1.dtype).itemsize

    def fused_need(w1_itemsize):
        feat_buf = 2 * 3 * C * hw * feat_itemsize                      # 3 slabs, double-buffered
        params = 2 * (w1_itemsize * C * 2 * C + 4 * (C + 2 * C + 2))   # conservative 2x buffers
        temps = 2 * C * (-(-hw // 128)) * 128 * 4                      # in-kernel f32 headroom
        return feat_buf + params + temps + (2 << 20)

    use_fused, w1_dtype = False, jnp.float32
    if not force_split and B >= 2:            # B<2: tiled split path keeps both v7x TCs busy
        if fused_need(4) <= budget:
            use_fused = True
        elif allow_bf16_fc_weight and fused_need(2) <= budget:
            use_fused, w1_dtype = True, jnp.bfloat16

    if use_fused:
        # Single feature read (~3 traffic units) vs ~5 for the split path.
        return _dbam_fused(feat1, feat2, w1, b1, w2, b2, w1_dtype=w1_dtype, cap=cap)
    return _dbam_split(feat1, feat2, w1, b1, w2, b2, cap=cap)


# --------------------------------------------------------------------------------------
# Pure-JAX reference (mirrors the PyTorch module forward)
# --------------------------------------------------------------------------------------
def reference(feat1, feat2, w1, b1, w2, b2):
    B, C, H, W = feat1.shape
    p1 = feat1.astype(jnp.float32).mean(axis=(2, 3))          # (B, C)
    p2 = feat2.astype(jnp.float32).mean(axis=(2, 3))          # (B, C)
    x = jnp.concatenate([p1, p2], axis=1)                     # (B, 2C)
    h = jnp.maximum(x @ w1.T + b1, 0.0)                       # (B, C)
    logits = h @ w2.T + b2                                    # (B, 2)
    weights = jax.nn.softmax(logits, axis=1)
    wa = weights[:, 0].reshape(B, 1, 1, 1)
    wb = weights[:, 1].reshape(B, 1, 1, 1)
    return feat1.astype(jnp.float32) * wa + feat2.astype(jnp.float32) * wb


if __name__ == "__main__":
    # Small stand-in for the real DBAM input (B, 2048, 7, 7): C=32, 7x7 spatial.
    # HW=49 deliberately exercises the no-pad full-dim blocks and true-HW mean normalization.
    B, C, H, W = 2, 32, 7, 7

    key = jax.random.PRNGKey(0)
    k1, k2, k3, k4, k5, k6 = jax.random.split(key, 6)

    feat1 = jax.random.normal(k1, (B, C, H, W), jnp.float32)
    feat2 = jax.random.normal(k2, (B, C, H, W), jnp.float32)

    # PyTorch Linear layout: (out_features, in_features).
    w1 = 0.05 * jax.random.normal(k3, (C, 2 * C), jnp.float32)   # Linear(2C -> C)
    b1 = 0.01 * jax.random.normal(k4, (C,), jnp.float32)
    w2 = 0.05 * jax.random.normal(k5, (2, C), jnp.float32)       # Linear(C -> 2)
    b2 = 0.01 * jax.random.normal(k6, (2,), jnp.float32)

    ref = reference(feat1, feat2, w1, b1, w2, b2)

    # 1) Fused single-read path (auto-selected at these shapes), f32 end-to-end.
    out_fused = jax.block_until_ready(dual_branch_attention(feat1, feat2, w1, b1, w2, b2))
    np.testing.assert_allclose(np.asarray(out_fused), np.asarray(ref), rtol=1e-5, atol=1e-5)

    # 2) Split two-pass path (the B<2 / VMEM-overflow fallback), f32 end-to-end.
    out_split = jax.block_until_ready(
        dual_branch_attention(feat1, feat2, w1, b1, w2, b2, force_split=True))
    np.testing.assert_allclose(np.asarray(out_split), np.asarray(ref), rtol=1e-5, atol=1e-5)

    # 3) Native bf16 features: dtype preserved through HBM/DMA on both paths (no f32 copies).
    f1b, f2b = feat1.astype(jnp.bfloat16), feat2.astype(jnp.bfloat16)
    ref_b = reference(f1b, f2b, w1, b1, w2, b2)
    out_b = jax.block_until_ready(dual_branch_attention(f1b, f2b, w1, b1, w2, b2))
    assert out_b.dtype == jnp.bfloat16
    np.testing.assert_allclose(np.asarray(jnp.asarray(out_b, jnp.float32)),
                               np.asarray(ref_b), rtol=2e-2, atol=2e-2)
    out_bs = jax.block_until_ready(
        dual_branch_attention(f1b, f2b, w1, b1, w2, b2, force_split=True))
    np.testing.assert_allclose(np.asarray(jnp.asarray(out_bs, jnp.float32)),
                               np.asarray(ref_b), rtol=2e-2, atol=2e-2)

    print("KERNEL_OK")
</pallas_src>

<mosaic_0001>
module attributes {stable_mosaic.version = 11 : i64} {
  func.func @_fused_dbam_kernel(%arg0: i32, %arg1: memref<1x32x49xf32, #tpu.memory_space<vmem>>, %arg2: memref<1x32x49xf32, #tpu.memory_space<vmem>>, %arg3: memref<32x64xf32, #tpu.memory_space<vmem>>, %arg4: memref<1x32xf32, #tpu.memory_space<vmem>>, %arg5: memref<2x32xf32, #tpu.memory_space<vmem>>, %arg6: memref<1x2xf32, #tpu.memory_space<vmem>>, %arg7: memref<1x32x49xf32, #tpu.memory_space<vmem>>) attributes {dimension_semantics = [#tpu.dimension_semantics<parallel>], iteration_bounds = array<i64: 2>, scalar_prefetch = 0 : i64, scratch_operands = 0 : i64, tpu.core_type = #tpu.core_type<tc>, window_params = [{transform_indices = @transform_0, window_bounds = array<i64: 1, 32, 49>}, {transform_indices = @transform_1, window_bounds = array<i64: 1, 32, 49>}, {pipeline_mode = #tpu.pipeline_mode<synchronous>, transform_indices = @transform_2, window_bounds = array<i64: 32, 64>}, {pipeline_mode = #tpu.pipeline_mode<synchronous>, transform_indices = @transform_3, window_bounds = array<i64: 1, 32>}, {pipeline_mode = #tpu.pipeline_mode<synchronous>, transform_indices = @transform_4, window_bounds = array<i64: 2, 32>}, {pipeline_mode = #tpu.pipeline_mode<synchronous>, transform_indices = @transform_5, window_bounds = array<i64: 1, 2>}, {transform_indices = @transform_6, window_bounds = array<i64: 1, 32, 49>}]} {
    %c0 = arith.constant 0 : index
    %c0_0 = arith.constant 0 : index
    %c0_1 = arith.constant 0 : index
    %0 = vector.load %arg1[%c0, %c0_0, %c0_1] : memref<1x32x49xf32, #tpu.memory_space<vmem>>, vector<1x32x49xf32>
    %1 = vector.shape_cast %0 : vector<1x32x49xf32> to vector<32x49xf32>
    %c0_2 = arith.constant 0 : index
    %c0_3 = arith.constant 0 : index
    %c0_4 = arith.constant 0 : index
    %2 = vector.load %arg2[%c0_2, %c0_3, %c0_4] : memref<1x32x49xf32, #tpu.memory_space<vmem>>, vector<1x32x49xf32>
    %3 = vector.shape_cast %2 : vector<1x32x49xf32> to vector<32x49xf32>
    %cst = arith.constant dense<0.000000e+00> : vector<32xf32>
    %4 = vector.multi_reduction <add>, %1, %cst [1] : vector<32x49xf32> to vector<32xf32>
    %cst_5 = arith.constant 0.0204081628 : f32
    %5 = vector.broadcast %cst_5 : f32 to vector<32xf32>
    %6 = arith.mulf %4, %5 : vector<32xf32>
    %7 = vector.shape_cast %6 : vector<32xf32> to vector<1x32xf32>
    %cst_6 = arith.constant dense<0.000000e+00> : vector<32xf32>
    %8 = vector.multi_reduction <add>, %3, %cst_6 [1] : vector<32x49xf32> to vector<32xf32>
    %cst_7 = arith.constant 0.0204081628 : f32
    %9 = vector.broadcast %cst_7 : f32 to vector<32xf32>
    %10 = arith.mulf %8, %9 : vector<32xf32>
    %11 = vector.shape_cast %10 : vector<32xf32> to vector<1x32xf32>
    %12 = tpu.concatenate %7, %11 in 1 : vector<1x32xf32>, vector<1x32xf32> -> vector<1x64xf32>
    %c0_8 = arith.constant 0 : index
    %c0_9 = arith.constant 0 : index
    %13 = vector.load %arg3[%c0_8, %c0_9] : memref<32x64xf32, #tpu.memory_space<vmem>>, vector<32x64xf32>
    %cst_10 = arith.constant dense<0.000000e+00> : vector<1x32xf32>
    %14 = tpu.matmul %12, %13, %cst_10 {dimension_numbers = #tpu.dot_dimension_numbers<[1], [1], [0], [0], [0, 0, 1, 0], [], []>} : vector<1x64xf32>, vector<32x64xf32>, vector<1x32xf32> -> vector<1x32xf32>
    %c0_11 = arith.constant 0 : index
    %c0_12 = arith.constant 0 : index
    %15 = vector.load %arg4[%c0_11, %c0_12] : memref<1x32xf32, #tpu.memory_space<vmem>>, vector<1x32xf32>
    %16 = arith.addf %14, %15 : vector<1x32xf32>
    %cst_13 = arith.constant 0.000000e+00 : f32
    %17 = vector.broadcast %cst_13 : f32 to vector<1x32xf32>
    %18 = arith.maximumf %16, %17 : vector<1x32xf32>
    %c0_14 = arith.constant 0 : index
    %c0_15 = arith.constant 0 : index
    %19 = vector.load %arg5[%c0_14, %c0_15] : memref<2x32xf32, #tpu.memory_space<vmem>>, vector<2x32xf32>
    %cst_16 = arith.constant dense<0.000000e+00> : vector<1x2xf32>
    %20 = tpu.matmul %18, %19, %cst_16 {dimension_numbers = #tpu.dot_dimension_numbers<[1], [1], [0], [0], [0, 0, 1, 0], [], []>} : vector<1x32xf32>, vector<2x32xf32>, vector<1x2xf32> -> vector<1x2xf32>
    %c0_17 = arith.constant 0 : index
    %c0_18 = arith.constant 0 : index
    %21 = vector.load %arg6[%c0_17, %c0_18] : memref<1x2xf32, #tpu.memory_space<vmem>>, vector<1x2xf32>
    %22 = arith.addf %20, %21 : vector<1x2xf32>
    %cst_19 = arith.constant dense<0xFF800000> : vector<1xf32>
    %23 = vector.multi_reduction <maximumf>, %22, %cst_19 [1] : vector<1x2xf32> to vector<1xf32>
    %24 = vector.shape_cast %23 : vector<1xf32> to vector<1x1xf32>
    %25 = vector.broadcast %24 : vector<1x1xf32> to vector<1x2xf32>
    %26 = arith.subf %22, %25 : vector<1x2xf32>
    %27 = math.exp %26 : vector<1x2xf32>
    %cst_20 = arith.constant dense<0.000000e+00> : vector<1xf32>
    %28 = vector.multi_reduction <add>, %27, %cst_20 [1] : vector<1x2xf32> to vector<1xf32>
    %29 = vector.shape_cast %28 : vector<1xf32> to vector<1x1xf32>
    %30 = vector.broadcast %29 : vector<1x1xf32> to vector<1x2xf32>
    %31 = arith.divf %27, %30 : vector<1x2xf32>
    %32 = vector.extract_strided_slice %31 {offsets = [0, 0], sizes = [1, 1], strides = [1, 1]} : vector<1x2xf32> to vector<1x1xf32>
    %33 = vector.extract %32[0, 0] : f32 from vector<1x1xf32>
    %34 = vector.extract_strided_slice %31 {offsets = [0, 1], sizes = [1, 1], strides = [1, 1]} : vector<1x2xf32> to vector<1x1xf32>
    %35 = vector.extract %34[0, 0] : f32 from vector<1x1xf32>
    %36 = vector.broadcast %33 : f32 to vector<32x49xf32>
    %37 = arith.mulf %1, %36 : vector<32x49xf32>
    %38 = vector.broadcast %35 : f32 to vector<32x49xf32>
    %39 = arith.mulf %3, %38 : vector<32x49xf32>
    %40 = arith.addf %37, %39 : vector<32x49xf32>
    %c0_21 = arith.constant 0 : index
    %c0_22 = arith.constant 0 : index
    %c0_23 = arith.constant 0 : index
    %41 = vector.load %arg7[%c0_21, %c0_22, %c0_23] : memref<1x32x49xf32, #tpu.memory_space<vmem>>, vector<1x32x49xf32>
    %42 = vector.shape_cast %41 : vector<1x32x49xf32> to vector<32x49xf32>
    %43 = vector.shape_cast %40 : vector<32x49xf32> to vector<1x32x49xf32>
    tpu.vector_store %arg7[%c0_21, %c0_22, %c0_23], %43 {strides = array<i32>} : memref<1x32x49xf32, #tpu.memory_space<vmem>>, vector<1x32x49xf32>,
    return
  }
  func.func @transform_0(%arg0: i32) -> (i32, i32, i32) {
    %c0_i32 = arith.constant 0 : i32
    %c0_i32_0 = arith.constant 0 : i32
    %c0_i32_1 = arith.constant 0 : i32
    return %arg0, %c0_i32, %c0_i32_0 : i32, i32, i32
  }
  func.func @transform_1(%arg0: i32) -> (i32, i32, i32) {
    %c0_i32 = arith.constant 0 : i32
    %c0_i32_0 = arith.constant 0 : i32
    %c0_i32_1 = arith.constant 0 : i32
    return %arg0, %c0_i32, %c0_i32_0 : i32, i32, i32
  }
  func.func @transform_2(%arg0: i32) -> (i32, i32) {
    %c0_i32 = arith.constant 0 : i32
    %c0_i32_0 = arith.constant 0 : i32
    %c0_i32_1 = arith.constant 0 : i32
    return %c0_i32, %c0_i32_0 : i32, i32
  }
  func.func @transform_3(%arg0: i32) -> (i32, i32) {
    %c0_i32 = arith.constant 0 : i32
    %c0_i32_0 = arith.constant 0 : i32
    %c0_i32_1 = arith.constant 0 : i32
    return %c0_i32, %c0_i32_0 : i32, i32
  }
  func.func @transform_4(%arg0: i32) -> (i32, i32) {
    %c0_i32 = arith.constant 0 : i32
    %c0_i32_0 = arith.constant 0 : i32
    %c0_i32_1 = arith.constant 0 : i32
    return %c0_i32, %c0_i32_0 : i32, i32
  }
  func.func @transform_5(%arg0: i32) -> (i32, i32) {
    %c0_i32 = arith.constant 0 : i32
    %c0_i32_0 = arith.constant 0 : i32
    %c0_i32_1 = arith.constant 0 : i32
    return %c0_i32, %c0_i32_0 : i32, i32
  }
  func.func @transform_6(%arg0: i32) -> (i32, i32, i32) {
    %c0_i32 = arith.constant 0 : i32
    %c0_i32_0 = arith.constant 0 : i32
    %c0_i32_1 = arith.constant 0 : i32
    return %arg0, %c0_i32, %c0_i32_0 : i32, i32, i32
  }
}

</mosaic_0001>

<llo_original>
// kernel: tpu_custom_call.1
$region0: #{tpu_custom_call.1}
  #allocation0 [shape = 'u32[]', space=smem, size = 0x4, offset = 0x4, fixed_abs, tag = 'smem constant byte address 0x4 - core index']
  #allocation1 [shape = 'u32[72,128]{1,0:T(1,128)}', space=vmem, size = 0x9000, scoped, tag = 'internal scratch']
  %s0 = inlined_call_operand.hbm [shape: f32[2,32,49], index: 0, kind: input, shape index: {}]
  %s1 = inlined_call_operand.hbm [shape: f32[2,32,49], index: 1, kind: input, shape index: {}]
  %s2 = inlined_call_operand.hbm [shape: f32[32,64], index: 2, kind: input, shape index: {}]
  %s3 = inlined_call_operand.vmem [shape: f32[1,32], index: 3, kind: input, shape index: {}]
  %s4 = inlined_call_operand.vmem [shape: f32[2,32], index: 4, kind: input, shape index: {}]
  %s5 = inlined_call_operand.vmem [shape: f32[1,2], index: 5, kind: input, shape index: {}]
  %s6 = inlined_call_operand.hbm [shape: f32[2,32,49], index: 6, kind: output, shape index: {}]
  %s7 = sld [smem:[#allocation0]]
  $region69: #{tpu_custom_call.1} parent=0
    _
  %s9 = ssub.s32 1, %s7
  %s10 = scalar_select 0, %s9, %s7
  $region1: #{tpu_custom_call.1} parent=0
    #allocation2 [shape = 'u8[32768]{0}', space=vmem, size = 0x8000, scoped, tag = 'input window, operand 0']
    #allocation3 [shape = 's32[2]{0}', space=sflag, size = 0x8, scoped, tag = 'scoped memory for tpu_custom_call.1']
    #allocation4 [shape = 's32[2]{0}', space=sflag, size = 0x8, scoped, tag = 'scoped memory for tpu_custom_call.1']
    #allocation5 [shape = 'u8[32768]{0}', space=vmem, size = 0x8000, scoped, tag = 'input window, operand 1']
    #allocation6 [shape = 's32[2]{0}', space=sflag, size = 0x8, scoped, tag = 'scoped memory for tpu_custom_call.1']
    #allocation7 [shape = 'u8[16384]{0}', space=vmem, size = 0x4000, scoped, tag = 'input window, operand 2, single buffered']
    #allocation8 [shape = 'u8[32768]{0}', space=vmem, size = 0x8000, scoped, tag = 'output window, operand 0']
    %11 = vsyncpa [#allocation3], 0
    %s12 = scalar_lea.sflag [#allocation3], 1
    %13 = vsyncpa %s12, 0
    %14 = vsyncpa [#allocation6], 0
    %s15 = scalar_lea.sflag [#allocation6], 1
    %16 = vsyncpa %s15, 0
    %17 = vsyncpa [#allocation4], 0
    %s18 = scalar_lea.sflag [#allocation4], 1
    %19 = vsyncpa %s18, 0
    loop: start=0, step=1, limit=4
    $region2: #{tpu_custom_call.1} parent=1 // loop_pre_header
      _
    $region3: #{tpu_custom_call.1} parent=1 // loop_header
      %s21 = sphi 0, %s25
      %p22 = scmp.ge.s32.totalorder %s21, 4
      %s31 = sphi 0, %s33
      %s34 = sphi 0, %s31
      %s35 = sphi 0, %s34
      %s51 = sphi 0, %s35
      %s57 = sphi 0, %s59
      %s60 = sphi 0, %s57
      %s61 = sphi 0, %s60
      %s77 = sphi 0, %s61
      %s81 = sphi 0, %s81
      %s83 = sphi 0, %s81
      %s84 = sphi 0, %s83
      %s98 = sphi 0, %s84
      %s102 = sphi 0, %s102
      %s104 = sphi 0, %s102
      %s105 = sphi 0, %s104
      %s119 = sphi 0, %s105
      %s123 = sphi 0, %s123
      %s125 = sphi 0, %s123
      %s126 = sphi 0, %s125
      %s140 = sphi 0, %s126
      %s144 = sphi 0, %s144
      %s146 = sphi 0, %s144
      %s147 = sphi 0, %s146
      %s161 = sphi 0, %s147
      %s167 = sphi 0, %s169
      %s170 = sphi 0, %s167
      %s171 = sphi 0, %s170
      %s187 = sphi 0, %s171
    $region4: #{tpu_custom_call.1} parent=1 // loop_header_branch
      %24 = sbr.rel (%p22) target = $region8
    $region5: #{tpu_custom_call.1} parent=1 // loop_body
      %s26 = ssub.s32 %s21, 1
      %s27 = ssub.s32 %s21, 2
      %s28 = sadd.s32 %s21, 1
      %s29 = ssub.s32 %s21, %s28
      %p30 = scmp.eq.s32.totalorder %s29, 0
      %s32 = sadd.s32 %s31, 1
      %s33 = scalar_select %p30, %s31, %s32
      %p36 = pneg %p30
      %p37 = scmp.eq.s32.totalorder %s21, 1
      %p38 = por %p36, %p37
      %p39 = scmp.ne.s32.totalorder %s31, %s34
      %p40 = scmp.eq.s32.totalorder %s21, 0
      %p41 = por %p39, %p40
      %p42 = scmp.ne.s32.totalorder %s31, %s34
      %p43 = scmp.eq.s32.totalorder %s26, 1
      %p44 = por %p42, %p43
      %p45 = scmp.ne.s32.totalorder %s34, %s35
      %p46 = scmp.eq.s32.totalorder %s26, 0
      %p47 = por %p45, %p46
      %p48 = scmp.ne.s32.totalorder %s34, %s35
      %p49 = scmp.eq.s32.totalorder %s27, 1
      %p50 = por %p48, %p49
      %p52 = scmp.ne.s32.totalorder %s35, %s51
      %p53 = scmp.eq.s32.totalorder %s27, 0
      %p54 = por %p52, %p53
      %s55 = ssub.s32 %s21, %s28
      %p56 = scmp.eq.s32.totalorder %s55, 0
      %s58 = sadd.s32 %s57, 1
      %s59 = scalar_select %p56, %s57, %s58
      %p62 = pneg %p56
      %p63 = scmp.eq.s32.totalorder %s21, 1
      %p64 = por %p62, %p63
      %p65 = scmp.ne.s32.totalorder %s57, %s60
      %p66 = scmp.eq.s32.totalorder %s21, 0
      %p67 = por %p65, %p66
      %p68 = scmp.ne.s32.totalorder %s57, %s60
      %p69 = scmp.eq.s32.totalorder %s26, 1
      %p70 = por %p68, %p69
      %p71 = scmp.ne.s32.totalorder %s60, %s61
      %p72 = scmp.eq.s32.totalorder %s26, 0
      %p73 = por %p71, %p72
      %p74 = scmp.ne.s32.totalorder %s60, %s61
      %p75 = scmp.eq.s32.totalorder %s27, 1
      %p76 = por %p74, %p75
      %p78 = scmp.ne.s32.totalorder %s61, %s77
      %p79 = scmp.eq.s32.totalorder %s27, 0
      %p80 = por %p78, %p79
      %s82 = sadd.s32 %s81, 1
      %p85 = scmp.eq.s32.totalorder %s21, 1
      %p86 = scmp.ne.s32.totalorder %s81, %s83
      %p87 = scmp.eq.s32.totalorder %s21, 0
      %p88 = por %p86, %p87
      %p89 = scmp.ne.s32.totalorder %s81, %s83
      %p90 = scmp.eq.s32.totalorder %s26, 1
      %p91 = por %p89, %p90
      %p92 = scmp.ne.s32.totalorder %s83, %s84
      %p93 = scmp.eq.s32.totalorder %s26, 0
      %p94 = por %p92, %p93
      %p95 = scmp.ne.s32.totalorder %s83, %s84
      %p96 = scmp.eq.s32.totalorder %s27, 1
      %p97 = por %p95, %p96
      %p99 = scmp.ne.s32.totalorder %s84, %s98
      %p100 = scmp.eq.s32.totalorder %s27, 0
      %p101 = por %p99, %p100
      %s103 = sadd.s32 %s102, 1
      %p106 = scmp.eq.s32.totalorder %s21, 1
      %p107 = scmp.ne.s32.totalorder %s102, %s104
      %p108 = scmp.eq.s32.totalorder %s21, 0
      %p109 = por %p107, %p108
      %p110 = scmp.ne.s32.totalorder %s102, %s104
      %p111 = scmp.eq.s32.totalorder %s26, 1
      %p112 = por %p110, %p111
      %p113 = scmp.ne.s32.totalorder %s104, %s105
      %p114 = scmp.eq.s32.totalorder %s26, 0
      %p115 = por %p113, %p114
      %p116 = scmp.ne.s32.totalorder %s104, %s105
      %p117 = scmp.eq.s32.totalorder %s27, 1
      %p118 = por %p116, %p117
      %p120 = scmp.ne.s32.totalorder %s105, %s119
      %p121 = scmp.eq.s32.totalorder %s27, 0
      %p122 = por %p120, %p121
      %s124 = sadd.s32 %s123, 1
      %p127 = scmp.eq.s32.totalorder %s21, 1
      %p128 = scmp.ne.s32.totalorder %s123, %s125
      %p129 = scmp.eq.s32.totalorder %s21, 0
      %p130 = por %p128, %p129
      %p131 = scmp.ne.s32.totalorder %s123, %s125
      %p132 = scmp.eq.s32.totalorder %s26, 1
      %p133 = por %p131, %p132
      %p134 = scmp.ne.s32.totalorder %s125, %s126
      %p135 = scmp.eq.s32.totalorder %s26, 0
      %p136 = por %p134, %p135
      %p137 = scmp.ne.s32.totalorder %s125, %s126
      %p138 = scmp.eq.s32.totalorder %s27, 1
      %p139 = por %p137, %p138
      %p141 = scmp.ne.s32.totalorder %s126, %s140
      %p142 = scmp.eq.s32.totalorder %s27, 0
      %p143 = por %p141, %p142
      %s145 = sadd.s32 %s144, 1
      %p148 = scmp.eq.s32.totalorder %s21, 1
      %p149 = scmp.ne.s32.totalorder %s144, %s146
      %p150 = scmp.eq.s32.totalorder %s21, 0
      %p151 = por %p149, %p150
      %p152 = scmp.ne.s32.totalorder %s144, %s146
      %p153 = scmp.eq.s32.totalorder %s26, 1
      %p154 = por %p152, %p153
      %p155 = scmp.ne.s32.totalorder %s146, %s147
      %p156 = scmp.eq.s32.totalorder %s26, 0
      %p157 = por %p155, %p156
      %p158 = scmp.ne.s32.totalorder %s146, %s147
      %p159 = scmp.eq.s32.totalorder %s27, 1
      %p160 = por %p158, %p159
      %p162 = scmp.ne.s32.totalorder %s147, %s161
      %p163 = scmp.eq.s32.totalorder %s27, 0
      %p164 = por %p162, %p163
      %s165 = ssub.s32 %s21, %s28
      %p166 = scmp.eq.s32.totalorder %s165, 0
      %s168 = sadd.s32 %s167, 1
      %s169 = scalar_select %p166, %s167, %s168
      %p172 = pneg %p166
      %p173 = scmp.eq.s32.totalorder %s21, 1
      %p174 = por %p172, %p173
      %p175 = scmp.ne.s32.totalorder %s167, %s170
      %p176 = scmp.eq.s32.totalorder %s21, 0
      %p177 = por %p175, %p176
      %p178 = scmp.ne.s32.totalorder %s167, %s170
      %p179 = scmp.eq.s32.totalorder %s26, 1
      %p180 = por %p178, %p179
      %p181 = scmp.ne.s32.totalorder %s170, %s171
      %p182 = scmp.eq.s32.totalorder %s26, 0
      %p183 = por %p181, %p182
      %p184 = scmp.ne.s32.totalorder %s170, %s171
      %p185 = scmp.eq.s32.totalorder %s27, 1
      %p186 = por %p184, %p185
      %p188 = scmp.ne.s32.totalorder %s171, %s187
      %p189 = scmp.eq.s32.totalorder %s27, 0
      %p190 = por %p188, %p189
      %p191 = scmp.le.s32.totalorder 1, %s21
      %p192 = scmp.lt.s32.totalorder %s21, 3
      %p193 = pnand %p191, %p192
      %p194 = pneg %p193
      // Predicated region
      $region9: #{tpu_custom_call.1} parent=5 // pred_check
        _
      $region10: #{tpu_custom_call.1} parent=5 // pred_check_branch
        %196 = sbr.rel (%p193) target = $region12
      $region11: #{tpu_custom_call.1} parent=5 // pred_region
        %s197 = ssub.s32 %s21, 1
        // Predicated region
        $region13: #{tpu_custom_call.1} parent=11 // pred_check
          %p198 = pneg %p94
        $region14: #{tpu_custom_call.1} parent=11 // pred_check_branch
          %200 = sbr.rel (%p198) target = $region16
        $region15: #{tpu_custom_call.1} parent=11 // pred_region
          %202 = vsyncadd [#allocation6], 0
          %s203 = sshll.u32 %s2, 4
          %s204 = int_to_ptr.hbm [resolvable:$true] %s203
          %s205 = sshll.u32 [#allocation7], 4
          %s206 = int_to_ptr.vmem [resolvable:$true] %s205
          %211 = dma.hbm_to_vmem [thread:$0]  %s204, 512, %s206, [#allocation6], 128, 128, 8
        $region16: #{tpu_custom_call.1} parent=11 // pred_fallthru
          _
        // Predicated region
        $region17: #{tpu_custom_call.1} parent=11 // pred_check
          %p212 = pneg %p115
        $region18: #{tpu_custom_call.1} parent=11 // pred_check_branch
          %214 = sbr.rel (%p212) target = $region20
        $region19: #{tpu_custom_call.1} parent=11 // pred_region
          _
        $region20: #{tpu_custom_call.1} parent=11 // pred_fallthru
          _
        // Predicated region
        $region21: #{tpu_custom_call.1} parent=11 // pred_check
          %p215 = pneg %p136
        $region22: #{tpu_custom_call.1} parent=11 // pred_check_branch
          %217 = sbr.rel (%p215) target = $region24
        $region23: #{tpu_custom_call.1} parent=11 // pred_region
          _
        $region24: #{tpu_custom_call.1} parent=11 // pred_fallthru
          _
        // Predicated region
        $region25: #{tpu_custom_call.1} parent=11 // pred_check
          %p218 = pneg %p157
        $region26: #{tpu_custom_call.1} parent=11 // pred_check_branch
          %220 = sbr.rel (%p218) target = $region28
        $region27: #{tpu_custom_call.1} parent=11 // pred_region
          _
        $region28: #{tpu_custom_call.1} parent=11 // pred_fallthru
          _
      $region12: #{tpu_custom_call.1} parent=5 // pred_fallthru
        _
      %p221 = scmp.lt.s32.totalorder %s21, 2
      // Predicated region
      $region29: #{tpu_custom_call.1} parent=5 // pred_check
        %p222 = pneg %p221
      $region30: #{tpu_custom_call.1} parent=5 // pred_check_branch
        %224 = sbr.rel (%p222) target = $region32
      $region31: #{tpu_custom_call.1} parent=5 // pred_region
        // Predicated region
        $region33: #{tpu_custom_call.1} parent=31 // pred_check
          %p225 = pneg %p41
        $region34: #{tpu_custom_call.1} parent=31 // pred_check_branch
          %227 = sbr.rel (%p225) target = $region36
        $region35: #{tpu_custom_call.1} parent=31 // pred_region
          %s228 = sand.u32 %s31, 1
          %s229 = scalar_lea.sflag [#allocation3], %s228
          %s230 = sand.u32 %s31, 1
          %s231 = smul.addr %s230, 32
          %s232 = scalar_lea.vmem [#allocation2], %s231
          %234 = vsyncadd %s229, 0
          %s235 = smul.addr %s21, 4
          %s236 = smul.addr %s235, 8
          %s237 = scalar_lea.hbm %s0, %s236
          %s238 = sshll.u32 %s237, 4
          %s239 = int_to_ptr.hbm [resolvable:$true] %s238
          %s240 = sshll.u32 %s232, 4
          %s241 = int_to_ptr.vmem [resolvable:$true] %s240
          %246 = dma.hbm_to_vmem [thread:$0]  %s239, 512, %s241, %s229, 128, 128, 8
        $region36: #{tpu_custom_call.1} parent=31 // pred_fallthru
          _
        // Predicated region
        $region37: #{tpu_custom_call.1} parent=31 // pred_check
          %p247 = pneg %p67
        $region38: #{tpu_custom_call.1} parent=31 // pred_check_branch
          %249 = sbr.rel (%p247) target = $region40
        $region39: #{tpu_custom_call.1} parent=31 // pred_region
          %s250 = sand.u32 %s21, 1
          %s251 = scalar_lea.sflag [#allocation6], %s250
          %s252 = sand.u32 %s57, 1
          %s253 = smul.addr %s252, 32
          %s254 = scalar_lea.vmem [#allocation5], %s253
          %256 = vsyncadd %s251, 0
          %s257 = smul.addr %s21, 4
          %s258 = smul.addr %s257, 8
          %s259 = scalar_lea.hbm %s1, %s258
          %s260 = sshll.u32 %s259, 4
          %s261 = int_to_ptr.hbm [resolvable:$true] %s260
          %s262 = sshll.u32 %s254, 4
          %s263 = int_to_ptr.vmem [resolvable:$true] %s262
          %268 = dma.hbm_to_vmem [thread:$0]  %s261, 512, %s263, %s251, 128, 128, 8
        $region40: #{tpu_custom_call.1} parent=31 // pred_fallthru
          _
      $region32: #{tpu_custom_call.1} parent=5 // pred_fallthru
        _
      %p269 = scmp.le.s32.totalorder 1, %s21
      %p270 = scmp.lt.s32.totalorder %s21, 3
      %p271 = pnand %p269, %p270
      %p272 = pneg %p271
      // Predicated region
      $region41: #{tpu_custom_call.1} parent=5 // pred_check
        _
      $region42: #{tpu_custom_call.1} parent=5 // pred_check_branch
        %274 = sbr.rel (%p271) target = $region44
      $region43: #{tpu_custom_call.1} parent=5 // pred_region
        %s275 = ssub.s32 %s21, 1
        %s276 = sand.u32 %s34, 1
        %s277 = scalar_lea.sflag [#allocation3], %s276
        %s278 = sand.u32 %s34, 1
        %s279 = smul.addr %s278, 32
        %s280 = scalar_lea.vmem [#allocation2], %s279
        // Predicated region
        $region45: #{tpu_custom_call.1} parent=43 // pred_check
          %p281 = pneg %p47
        $region46: #{tpu_custom_call.1} parent=43 // pred_check_branch
          %283 = sbr.rel (%p281) target = $region48
        $region47: #{tpu_custom_call.1} parent=43 // pred_region
          %285 = dma.done %s277, 512
        $region48: #{tpu_custom_call.1} parent=43 // pred_fallthru
          _
        %s286 = sand.u32 %s26, 1
        %s287 = scalar_lea.sflag [#allocation6], %s286
        %s288 = sand.u32 %s60, 1
        %s289 = smul.addr %s288, 32
        %s290 = scalar_lea.vmem [#allocation5], %s289
        // Predicated region
        $region49: #{tpu_custom_call.1} parent=43 // pred_check
          %p291 = pneg %p73
        $region50: #{tpu_custom_call.1} parent=43 // pred_check_branch
          %293 = sbr.rel (%p291) target = $region52
        $region51: #{tpu_custom_call.1} parent=43 // pred_region
          %295 = dma.done %s287, 512
        $region52: #{tpu_custom_call.1} parent=43 // pred_fallthru
          _
        // Predicated region
        $region53: #{tpu_custom_call.1} parent=43 // pred_check
          %p296 = pneg %p94
        $region54: #{tpu_custom_call.1} parent=43 // pred_check_branch
          %298 = sbr.rel (%p296) target = $region56
        $region55: #{tpu_custom_call.1} parent=43 // pred_region
          %300 = dma.done [#allocation6], 512
        $region56: #{tpu_custom_call.1} parent=43 // pred_fallthru
          _
        %s301 = sand.u32 %s34, 1
        %s302 = scalar_lea.sflag [#allocation3], %s301
        %s303 = sand.u32 %s34, 1
        %s304 = smul.addr %s303, 32
        %s305 = scalar_lea.vmem [#allocation2], %s304
        %p306 = pneg %p47
        %p307 = pneg %p44
        %s308 = sand.u32 %s26, 1
        %s309 = scalar_lea.sflag [#allocation6], %s308
        %s310 = sand.u32 %s60, 1
        %s311 = smul.addr %s310, 32
        %s312 = scalar_lea.vmem [#allocation5], %s311
        %p313 = pneg %p73
        %p314 = pneg %p70
        %p315 = pneg %p94
        %p316 = pneg %p91
        %p317 = pneg %p115
        %p318 = pneg %p112
        %p319 = pneg %p136
        %p320 = pneg %p133
        %p321 = pneg %p157
        %p322 = pneg %p154
        %p323 = pneg %p183
        %p324 = pneg %p180
        %s325 = sand.u32 %s170, 1
        %s326 = scalar_lea.sflag [#allocation4], %s325
        %s327 = sand.u32 %s170, 1
        %s328 = smul.addr %s327, 32
        %s329 = scalar_lea.vmem [#allocation8], %s328
        %v330 = vld [vmem:[%s280] sm:$0xff]
        %v331 = vld [vmem:[%s280 + $0x8] sm:$0xff]
        %v332 = vld [vmem:[%s280 + $0x10] sm:$0xff]
        %v333 = vld [vmem:[%s280 + $0x18] sm:$0xff]
        %v334 = vld [vmem:[%s290] sm:$0xff]
        %v335 = vld [vmem:[%s290 + $0x8] sm:$0xff]
        %v336 = vld [vmem:[%s290 + $0x10] sm:$0xff]
        %v337 = vld [vmem:[%s290 + $0x18] sm:$0xff]
        %vm338 = vcmask 400384
        %v339 = vsel %vm338, %v330, 0.0
        %340 = vadd.xlane.f32.xlu0 %v339
        %v341 = vpop.xlane.xlu0 %340
        %v342 = vsel %vm338, %v331, 0.0
        %343 = vadd.xlane.f32.xlu0 %v342
        %v344 = vpop.xlane.xlu0 %343
        %v345 = vsel %vm338, %v332, 0.0
        %346 = vadd.xlane.f32.xlu0 %v345
        %v347 = vpop.xlane.xlu0 %346
        %v348 = vsel %vm338, %v333, 0.0
        %349 = vadd.xlane.f32.xlu0 %v348
        %v350 = vpop.xlane.xlu0 %349
        %v351 = vmul.f32 %v341, 0.020408163
        %v352 = vmul.f32 %v344, 0.020408163
        %v353 = vmul.f32 %v347, 0.020408163
        %v354 = vmul.f32 %v350, 0.020408163
        %v355 = vsel %vm338, %v334, 0.0
        %356 = vadd.xlane.f32.xlu0 %v355
        %v357 = vpop.xlane.xlu0 %356
        %v358 = vsel %vm338, %v335, 0.0
        %359 = vadd.xlane.f32.xlu0 %v358
        %v360 = vpop.xlane.xlu0 %359
        %v361 = vsel %vm338, %v336, 0.0
        %362 = vadd.xlane.f32.xlu0 %v361
        %v363 = vpop.xlane.xlu0 %362
        %v364 = vsel %vm338, %v337, 0.0
        %365 = vadd.xlane.f32.xlu0 %v364
        %v366 = vpop.xlane.xlu0 %365
        %v367 = vmul.f32 %v357, 0.020408163
        %v368 = vmul.f32 %v360, 0.020408163
        %v369 = vmul.f32 %v363, 0.020408163
        %v370 = vmul.f32 %v366, 0.020408163
        %v375 = vlaneseq
        %v376 = vand.u32 %v375, 127
        %v377 = vperm.slane %v351, %v376
        %v378 = vadd.s32 %v376, 4294967288
        %v379 = vperm.slane %v352, %v378
        %vm380 = vcmask 130112
        %v381 = vsel %vm380, %v379, %v377
        %v382 = vadd.s32 %v376, 4294967280
        %v383 = vperm.slane %v353, %v382
        %vm384 = vcmask 195712
        %v385 = vsel %vm384, %v383, %v381
        %v386 = vadd.s32 %v376, 4294967272
        %v387 = vperm.slane %v354, %v386
        %vm388 = vcmask 261312
        %v389 = vsel %vm388, %v387, %v385
        %v395 = vadd.s32 %v376, 4294967264
        %v396 = vperm.slane %v367, %v395
        %v397 = vadd.s32 %v376, 4294967256
        %v398 = vperm.slane %v368, %v397
        %vm399 = vcmask 392512
        %v400 = vsel %vm399, %v398, %v396
        %v401 = vadd.s32 %v376, 4294967248
        %v402 = vperm.slane %v369, %v401
        %vm403 = vcmask 458112
        %v404 = vsel %vm403, %v402, %v400
        %v405 = vadd.s32 %v376, 4294967240
        %v406 = vperm.slane %v370, %v405
        %vm407 = vcmask 523712
        %v408 = vsel %vm407, %v406, %v404
        %vm410 = vcmask 261120
        %v411 = vsel %vm410, %v389, %v408
        %v412 = vld [vmem:[#allocation7] sm:$0xff]
        %v413 = vld [vmem:[#allocation7 + $0x8] sm:$0xff]
        %v414 = vld [vmem:[#allocation7 + $0x10] sm:$0xff]
        %v415 = vld [vmem:[#allocation7 + $0x18] sm:$0xff]
        %v416 = vld [vmem:[%s3] sm:$0x1]
        %vm417 = vcmask 523264
        %v419 = vsel %vm417, %v411, 0
        %v422 = vsel %vm417, %v412, 0
        %v425 = vsel %vm417, %v413, 0
        %v428 = vsel %vm417, %v414, 0
        %v431 = vsel %vm417, %v415, 0
        %433 = vmatpush.xpose.msra.mxu0 0.0
        %434 = vmatpush.xpose.msra.mxu0 0.0
        %435 = vmatpush.xpose.msra.mxu0 0.0
        %436 = vmatpush.xpose.msra.mxu0 0.0
        %437 = vmatpush.xpose.msra.mxu0 0.0
        %438 = vmatpush.xpose.msra.mxu0 0.0
        %439 = vmatpush.xpose.msra.mxu0 0.0
        %440 = vmatpush.xpose.msra.mxu0 0.0
        %441 = vmatpush.xpose.msra.mxu0 0.0
        %442 = vmatpush.xpose.msra.mxu0 0.0
        %443 = vmatpush.xpose.msra.mxu0 0.0
        %444 = vmatpush.xpose.msra.mxu0 0.0
        %445 = vmatpush.xpose.msra.mxu0 %v431
        %446 = vmatpush.xpose.msra.mxu0 %v428
        %447 = vmatpush.xpose.msra.mxu0 %v425
        %448 = vmatpush.xpose.msra.mxu0 %v422
        %449 = vmatmul.f32.gmra.mxu0 %v419
        %v450 = vpop.f32.mrf.mxu0
        %v451 = vadd.f32 %v416, %v450
        %452 = vdwg.mxu0
        %v453 = vmax.f32 %v451, 0.0
        %v454 = vld [vmem:[%s4] sm:$0x3]
        %v455 = vld [vmem:[%s5] sm:$0x1]
        %v457 = vsel %vm410, %v453, 0
        %v460 = vsel %vm410, %v454, 0
        %462 = vmatpush.xpose.msra.mxu0 0.0
        %463 = vmatpush.xpose.msra.mxu0 0.0
        %464 = vmatpush.xpose.msra.mxu0 0.0
        %465 = vmatpush.xpose.msra.mxu0 0.0
        %466 = vmatpush.xpose.msra.mxu0 0.0
        %467 = vmatpush.xpose.msra.mxu0 0.0
        %468 = vmatpush.xpose.msra.mxu0 0.0
        %469 = vmatpush.xpose.msra.mxu0 0.0
        %470 = vmatpush.xpose.msra.mxu0 0.0
        %471 = vmatpush.xpose.msra.mxu0 0.0
        %472 = vmatpush.xpose.msra.mxu0 0.0
        %473 = vmatpush.xpose.msra.mxu0 0.0
        %474 = vmatpush.xpose.msra.mxu0 0.0
        %475 = vmatpush.xpose.msra.mxu0 0.0
        %476 = vmatpush.xpose.msra.mxu0 0.0
        %477 = vmatpush.xpose.msra.mxu0 %v460
        %478 = vmatmul.f32.gmra.mxu0 %v457
        %v479 = vpop.f32.mrf.mxu0
        %v480 = vadd.f32 %v455, %v479
        %481 = vdwg.mxu0
        %vm482 = vcmask 8192
        %v483 = vsel %vm482, %v480, -inf
        %484 = vmax.xlane.f32.xlu0 %v483
        %v485 = vpop.xlane.xlu0 %484
        %v486 = vsub.f32 %v480, %v485
        %v487 = vmul.f32 %v486, 1.442695
        %v488 = vpow.pop %v487
        %v489 = vsel %vm482, %v488, 0.0
        %490 = vadd.xlane.f32.xlu0 %v489
        %v491 = vpop.xlane.xlu0 %490
        %v492 = vrcp.pop %v491
        %v493 = vmul.f32 %v491, %v492
        %v494 = vsub.f32 1.0, %v493
        %v495 = vmul.f32 %v492, %v494
        %v496 = vadd.f32 %v492, %v495
        %vm497 = vweird.f32 %v491
        %vm498 = vweird.f32 %v492
        %vm499 = vmor %vm497, %vm498
        %v500 = vsel %vm499, %v492, %v496
        %v501 = vand.u32 2147483647, %v491
        %vm502 = vcmp.eq.f32.partialorder %v501, 8.507059e+37
        %v503 = vand.u32 %v491, 2147483648
        %v504 = vor.u32 1.1754944e-38, %v503
        %v505 = vsel %vm502, %v504, %v500
        %v506 = vmul.f32 %v488, %v505
        %s507 = vtos %v506
        %508 = vrot.lane.b32.xlu0 %v506, 127
        %v509 = vpop.permute.xlu0 %508
        %s510 = vtos %v509
        %v511 = vstv %s507
        %v512 = vmul.f32 %v330, %v511
        %v513 = vmul.f32 %v331, %v511
        %v514 = vmul.f32 %v332, %v511
        %v515 = vmul.f32 %v333, %v511
        %v516 = vstv %s510
        %v517 = vmul.f32 %v334, %v516
        %v518 = vmul.f32 %v335, %v516
        %v519 = vmul.f32 %v336, %v516
        %v520 = vmul.f32 %v337, %v516
        %v521 = vadd.f32 %v512, %v517
        %v522 = vadd.f32 %v513, %v518
        %v523 = vadd.f32 %v514, %v519
        %v524 = vadd.f32 %v515, %v520
        %525 = vst.msk [vmem:[%s329] sm:$0xff] %vm338, %v521
        %526 = vst.msk [vmem:[%s329 + $0x8] sm:$0xff] %vm338, %v522
        %527 = vst.msk [vmem:[%s329 + $0x10] sm:$0xff] %vm338, %v523
        %528 = vst.msk [vmem:[%s329 + $0x18] sm:$0xff] %vm338, %v524
        %s529 = sand.u32 %s170, 1
        %s530 = scalar_lea.sflag [#allocation4], %s529
        %s531 = sand.u32 %s170, 1
        %s532 = smul.addr %s531, 32
        %s533 = scalar_lea.vmem [#allocation8], %s532
        // Predicated region
        $region57: #{tpu_custom_call.1} parent=43 // pred_check
          %p534 = pneg %p180
        $region58: #{tpu_custom_call.1} parent=43 // pred_check_branch
          %536 = sbr.rel (%p534) target = $region60
        $region59: #{tpu_custom_call.1} parent=43 // pred_region
          %538 = vsyncadd %s530, 0
          %s539 = smul.addr %s26, 4
          %s540 = smul.addr %s539, 8
          %s541 = scalar_lea.hbm %s6, %s540
          %s542 = sshll.u32 %s533, 4
          %s543 = int_to_ptr.vmem [resolvable:$true] %s542
          %s544 = sshll.u32 %s541, 4
          %s545 = int_to_ptr.hbm [resolvable:$true] %s544
          %550 = dma.vmem_to_hbm [thread:$0]  %s543, 512, %s545, %s530, 128, 128, 8
        $region60: #{tpu_custom_call.1} parent=43 // pred_fallthru
          _
      $region44: #{tpu_custom_call.1} parent=5 // pred_fallthru
        _
      %p551 = scmp.le.s32.totalorder 2, %s21
      // Predicated region
      $region61: #{tpu_custom_call.1} parent=5 // pred_check
        %p552 = pneg %p551
      $region62: #{tpu_custom_call.1} parent=5 // pred_check_branch
        %554 = sbr.rel (%p552) target = $region64
      $region63: #{tpu_custom_call.1} parent=5 // pred_region
        %s555 = ssub.s32 %s21, 2
        // Predicated region
        $region65: #{tpu_custom_call.1} parent=63 // pred_check
          %p556 = pneg %p186
        $region66: #{tpu_custom_call.1} parent=63 // pred_check_branch
          %558 = sbr.rel (%p556) target = $region68
        $region67: #{tpu_custom_call.1} parent=63 // pred_region
          %s559 = sand.u32 %s171, 1
          %s560 = scalar_lea.sflag [#allocation4], %s559
          %s561 = sand.u32 %s171, 1
          %s562 = smul.addr %s561, 32
          %s563 = scalar_lea.vmem [#allocation8], %s562
          %565 = dma.done %s560, 512
        $region68: #{tpu_custom_call.1} parent=63 // pred_fallthru
          _
      $region64: #{tpu_custom_call.1} parent=5 // pred_fallthru
        _
    $region6: #{tpu_custom_call.1} parent=1 // loop_footer
      %s25 = sadd.s32 1, %s21
    $region7: #{tpu_custom_call.1} parent=1 // loop_footer_branch
      %20 = sbr.rel target = $region3
    $region8: #{tpu_custom_call.1} parent=1 // loop_exit
      _
    %566 = vsyncpa [#allocation3], 1
    %s567 = scalar_lea.sflag [#allocation3], 1
    %568 = vsyncpa %s567, 1
    %569 = vsyncpa [#allocation6], 1
    %s570 = scalar_lea.sflag [#allocation6], 1
    %571 = vsyncpa %s570, 1
    %572 = vsyncpa [#allocation4], 1
    %s573 = scalar_lea.sflag [#allocation4], 1
    %574 = vsyncpa %s573, 1

</llo_original>
